<compile_context>
chip_gen: v5e
topology: v5e:2x2
jax: 0.10.0
libtpu: 0.0.40
codegen_flags: <defaults>
</compile_context>

<pallas_src>
import functools

import jax
import jax.numpy as jnp
from jax.experimental import pallas as pl
from jax.experimental.pallas import tpu as pltpu


def _gcn_kernel(*refs, bs, n, o_pad, nsupport):
    # refs (nsupport > 1):  x_ref (bs*N, F), adj_ref (S-1, N, N),
    #                       w_ref (F, S*O_pad), b_ref (1, O_pad), o_ref (bs*N, O_pad)
    # refs (nsupport == 1): x_ref, w_ref, b_ref, o_ref
    if nsupport > 1:
        x_ref, adj_ref, w_ref, b_ref, o_ref = refs
    else:
        x_ref, w_ref, b_ref, o_ref = refs
        adj_ref = None

    x = x_ref[...]
    w = w_ref[...]
    bias = b_ref[...]

    # One wide MXU contraction computes X @ W_s for every support and batch.
    y = jnp.dot(x, w, preferred_element_type=jnp.float32)    # (bs*N, S*O_pad)

    if nsupport == 1:
        out = y[:, 0:o_pad]                                   # identity support only
    else:
        adj = adj_ref[...]
        parts = []
        for b in range(bs):                                   # static tiny unroll
            rows = slice(b * n, (b + 1) * n)
            acc = y[rows, 0:o_pad]                            # identity support
            for s in range(1, nsupport):                      # static tiny unroll
                ys = y[rows, s * o_pad:(s + 1) * o_pad]       # lane-aligned 128-block
                # Narrow to the MXU feed dtype only if bf16 compute was requested
                # (no-op when adj is f32).
                acc = acc + jnp.dot(adj[s - 1], ys.astype(adj.dtype),
                                    preferred_element_type=jnp.float32)
            parts.append(acc)
        out = parts[0] if bs == 1 else jnp.concatenate(parts, axis=0)

    # Single broadcast bias add + one full-block, lane-dense store.
    o_ref[...] = (out + bias).astype(o_ref.dtype)


def graph_convolution(x, adj, w_lin, b_lin, *, compute_dtype=None):
    """Pallas GraphConvolution forward.

    x:     (bs*N, F)   node features, batches stacked along rows
    adj:   (S, N, N)   supports (support 0 is the implicit identity)
    w_lin: (O, F*S)    nn.Linear weight (column index = f*S + s)
    b_lin: (O,)        nn.Linear bias
    compute_dtype: optional MXU feed dtype (e.g. jnp.bfloat16 on v6e/v7x);
                   accumulation stays f32, output keeps x.dtype.
    returns (bs*N, O)
    """
    total_n, feat = x.shape
    nsupport, n, _ = adj.shape
    assert total_n % n == 0, "input rows must be a multiple of adj size N"
    bs = total_n // n
    out_feat = w_lin.shape[0]
    o_pad = ((out_feat + 127) // 128) * 128            # lane-dense output columns

    # Linear weight (O, F*S) with column index f*S + s  ->  (F, S*O_pad) with
    # contiguous 128-aligned per-support column blocks [W_0 | W_1 | ...].
    w_sfo = jnp.transpose(w_lin.reshape(out_feat, feat, nsupport), (2, 1, 0))
    w_sfo = jnp.pad(w_sfo, ((0, 0), (0, 0), (0, o_pad - out_feat)))
    w_all = jnp.transpose(w_sfo, (1, 0, 2)).reshape(feat, nsupport * o_pad)
    bias = jnp.pad(b_lin, (0, o_pad - out_feat)).reshape(1, o_pad).astype(jnp.float32)

    # Support 0 is the implicit identity: never ship adj[0] (or, for S==1,
    # any adjacency at all) to VMEM.
    adj_in = adj[1:] if nsupport > 1 else None

    x_in = x
    if compute_dtype is not None:
        x_in = x_in.astype(compute_dtype)
        w_all = w_all.astype(compute_dtype)
        if adj_in is not None:
            adj_in = adj_in.astype(compute_dtype)

    kernel = functools.partial(_gcn_kernel, bs=bs, n=n, o_pad=o_pad,
                               nsupport=nsupport)

    in_specs = [pl.BlockSpec((total_n, feat), lambda i: (0, 0))]
    inputs = [x_in]
    if adj_in is not None:
        n_adj = adj_in.shape[0]
        in_specs.append(pl.BlockSpec((n_adj, n, n), lambda i: (0, 0, 0)))
        inputs.append(adj_in)
    in_specs += [
        pl.BlockSpec((feat, nsupport * o_pad), lambda i: (0, 0)),
        pl.BlockSpec((1, o_pad), lambda i: (0, 0)),
    ]
    inputs += [w_all, bias]

    # VMEM budget: double-buffered operands + output + f32 intermediate + slack.
    out_bytes = total_n * o_pad * x.dtype.itemsize
    vmem_needed = 2 * sum(int(a.size) * a.dtype.itemsize for a in inputs)
    vmem_needed += 2 * out_bytes
    vmem_needed += total_n * nsupport * o_pad * 4      # f32 Y intermediate
    vmem_limit = int(min(100 * 1024 * 1024,
                         max(vmem_needed + (2 << 20), 32 << 20)))

    flops = 2 * total_n * feat * nsupport * o_pad
    flops += 2 * bs * max(nsupport - 1, 0) * n * n * o_pad
    bytes_accessed = sum(int(a.size) * a.dtype.itemsize for a in inputs) + out_bytes

    out_pad = pl.pallas_call(
        kernel,
        out_shape=jax.ShapeDtypeStruct((total_n, o_pad), x.dtype),
        grid_spec=pltpu.PrefetchScalarGridSpec(
            num_scalar_prefetch=0,
            grid=(1,),                                 # single step: all batches
            in_specs=in_specs,
            out_specs=pl.BlockSpec((total_n, o_pad), lambda i: (0, 0)),
        ),
        compiler_params=pltpu.CompilerParams(
            dimension_semantics=("arbitrary",),
            vmem_limit_bytes=vmem_limit),
        cost_estimate=pl.CostEstimate(flops=flops, transcendentals=0,
                                      bytes_accessed=bytes_accessed),
    )(*inputs)

    # TODO(synk): for large N / bs, row-tile over batches with an 'arbitrary'
    # reduction axis and a VMEM accumulator so the (S-1, N, N) adjacency block
    # and the f32 intermediate fit v7x's 64 MiB physical VMEM.
    return out_pad[:, :out_feat]


def _reference(x, adj, w_lin, b_lin):
    """Pure-JAX transcription of the PyTorch forward (for verification)."""
    nsupport, n, _ = adj.shape
    bs = x.shape[0] // n
    outs = []
    for ix in range(bs):
        xs = x[ix * n:(ix + 1) * n]
        cheb = [xs[:, :, None]]
        for s in range(1, nsupport):
            cheb.append((adj[s] @ xs)[:, :, None])
        cheb = jnp.concatenate(cheb, axis=2).reshape(n, -1)
        outs.append(cheb @ w_lin.T + b_lin)
    return jnp.concatenate(outs, axis=0)


if __name__ == "__main__":
    # Small shapes: in_features=4, out_features=32, num_support=3, N=8, bs=2.
    in_features, out_features, num_support = 4, 32, 3
    n_nodes, batch = 8, 2

    key = jax.random.PRNGKey(0)
    k_x, k_adj, k_w, k_b = jax.random.split(key, 4)

    x = jax.random.normal(k_x, (batch * n_nodes, in_features), jnp.float32)
    adj = jax.random.normal(k_adj, (num_support, n_nodes, n_nodes), jnp.float32)

    # Deterministic parameter init (synthetic; nn.Linear(F*S, O) shapes).
    w_lin = jax.random.normal(
        k_w, (out_features, in_features * num_support), jnp.float32) * 0.1
    b_lin = jax.random.normal(k_b, (out_features,), jnp.float32) * 0.1
    # NOTE: module's optional extra `self.bias` (bias=False default) is omitted.

    ref = _reference(x, adj, w_lin, b_lin)

    # f32 path: exact (tight tolerance) vs. reference.
    out = jax.block_until_ready(graph_convolution(x, adj, w_lin, b_lin))
    assert out.shape == (batch * n_nodes, out_features)
    assert jnp.allclose(out, ref, atol=1e-4, rtol=1e-4), "f32 mismatch vs reference"

    # bf16 MXU-feed path (v6e/v7x fast path), f32 accumulation, looser tolerance.
    out_bf16 = jax.block_until_ready(
        graph_convolution(x, adj, w_lin, b_lin, compute_dtype=jnp.bfloat16))
    assert out_bf16.shape == (batch * n_nodes, out_features)
    assert jnp.allclose(out_bf16, ref, atol=5e-2, rtol=5e-2), "bf16 mismatch vs reference"

    # Single-support edge case (identity only; no adjacency operand is shipped).
    w1 = w_lin[:, ::num_support]            # (O, F) == nn.Linear(F*1, O) weight
    out_s1 = jax.block_until_ready(
        graph_convolution(x, adj[:1], w1, b_lin))
    ref_s1 = _reference(x, adj[:1], w1, b_lin)
    assert jnp.allclose(out_s1, ref_s1, atol=1e-4, rtol=1e-4), "S=1 mismatch"

    print("KERNEL_OK")
</pallas_src>

<mosaic_0001>
module attributes {stable_mosaic.version = 11 : i64} {
  func.func @_gcn_kernel(%arg0: i32, %arg1: memref<16x4xf32, #tpu.memory_space<vmem>>, %arg2: memref<2x8x8xf32, #tpu.memory_space<vmem>>, %arg3: memref<4x384xf32, #tpu.memory_space<vmem>>, %arg4: memref<1x128xf32, #tpu.memory_space<vmem>>, %arg5: memref<16x128xf32, #tpu.memory_space<vmem>>) attributes {dimension_semantics = [#tpu.dimension_semantics<arbitrary>], iteration_bounds = array<i64: 1>, scalar_prefetch = 0 : i64, scratch_operands = 0 : i64, tpu.core_type = #tpu.core_type<tc>, window_params = [{pipeline_mode = #tpu.pipeline_mode<synchronous>, transform_indices = @transform_0, window_bounds = array<i64: 16, 4>}, {pipeline_mode = #tpu.pipeline_mode<synchronous>, transform_indices = @transform_1, window_bounds = array<i64: 2, 8, 8>}, {pipeline_mode = #tpu.pipeline_mode<synchronous>, transform_indices = @transform_2, window_bounds = array<i64: 4, 384>}, {pipeline_mode = #tpu.pipeline_mode<synchronous>, transform_indices = @transform_3, window_bounds = array<i64: 1, 128>}, {pipeline_mode = #tpu.pipeline_mode<synchronous>, transform_indices = @transform_4, window_bounds = array<i64: 16, 128>}]} {
    %c0 = arith.constant 0 : index
    %c0_0 = arith.constant 0 : index
    %0 = vector.load %arg1[%c0, %c0_0] : memref<16x4xf32, #tpu.memory_space<vmem>>, vector<16x4xf32>
    %c0_1 = arith.constant 0 : index
    %c0_2 = arith.constant 0 : index
    %1 = vector.load %arg3[%c0_1, %c0_2] : memref<4x384xf32, #tpu.memory_space<vmem>>, vector<4x384xf32>
    %c0_3 = arith.constant 0 : index
    %c0_4 = arith.constant 0 : index
    %2 = vector.load %arg4[%c0_3, %c0_4] : memref<1x128xf32, #tpu.memory_space<vmem>>, vector<1x128xf32>
    %cst = arith.constant dense<0.000000e+00> : vector<16x384xf32>
    %3 = tpu.matmul %0, %1, %cst {dimension_numbers = #tpu.dot_dimension_numbers<[1], [0], [0], [1], [0, 0, 1, 1], [], []>} : vector<16x4xf32>, vector<4x384xf32>, vector<16x384xf32> -> vector<16x384xf32>
    %c0_5 = arith.constant 0 : index
    %c0_6 = arith.constant 0 : index
    %c0_7 = arith.constant 0 : index
    %4 = vector.load %arg2[%c0_5, %c0_6, %c0_7] : memref<2x8x8xf32, #tpu.memory_space<vmem>>, vector<2x8x8xf32>
    %5 = vector.extract_strided_slice %3 {offsets = [0, 0], sizes = [8, 128], strides = [1, 1]} : vector<16x384xf32> to vector<8x128xf32>
    %6 = vector.extract_strided_slice %3 {offsets = [0, 128], sizes = [8, 128], strides = [1, 1]} : vector<16x384xf32> to vector<8x128xf32>
    %7 = vector.extract_strided_slice %4 {offsets = [0, 0, 0], sizes = [1, 8, 8], strides = [1, 1, 1]} : vector<2x8x8xf32> to vector<1x8x8xf32>
    %8 = vector.shape_cast %7 : vector<1x8x8xf32> to vector<8x8xf32>
    %cst_8 = arith.constant dense<0.000000e+00> : vector<8x128xf32>
    %9 = tpu.matmul %8, %6, %cst_8 {dimension_numbers = #tpu.dot_dimension_numbers<[1], [0], [0], [1], [0, 0, 1, 1], [], []>} : vector<8x8xf32>, vector<8x128xf32>, vector<8x128xf32> -> vector<8x128xf32>
    %10 = arith.addf %5, %9 : vector<8x128xf32>
    %11 = vector.extract_strided_slice %3 {offsets = [0, 256], sizes = [8, 128], strides = [1, 1]} : vector<16x384xf32> to vector<8x128xf32>
    %12 = vector.extract_strided_slice %4 {offsets = [1, 0, 0], sizes = [1, 8, 8], strides = [1, 1, 1]} : vector<2x8x8xf32> to vector<1x8x8xf32>
    %13 = vector.shape_cast %12 : vector<1x8x8xf32> to vector<8x8xf32>
    %cst_9 = arith.constant dense<0.000000e+00> : vector<8x128xf32>
    %14 = tpu.matmul %13, %11, %cst_9 {dimension_numbers = #tpu.dot_dimension_numbers<[1], [0], [0], [1], [0, 0, 1, 1], [], []>} : vector<8x8xf32>, vector<8x128xf32>, vector<8x128xf32> -> vector<8x128xf32>
    %15 = arith.addf %10, %14 : vector<8x128xf32>
    %16 = vector.extract_strided_slice %3 {offsets = [8, 0], sizes = [8, 128], strides = [1, 1]} : vector<16x384xf32> to vector<8x128xf32>
    %17 = vector.extract_strided_slice %3 {offsets = [8, 128], sizes = [8, 128], strides = [1, 1]} : vector<16x384xf32> to vector<8x128xf32>
    %18 = vector.extract_strided_slice %4 {offsets = [0, 0, 0], sizes = [1, 8, 8], strides = [1, 1, 1]} : vector<2x8x8xf32> to vector<1x8x8xf32>
    %19 = vector.shape_cast %18 : vector<1x8x8xf32> to vector<8x8xf32>
    %cst_10 = arith.constant dense<0.000000e+00> : vector<8x128xf32>
    %20 = tpu.matmul %19, %17, %cst_10 {dimension_numbers = #tpu.dot_dimension_numbers<[1], [0], [0], [1], [0, 0, 1, 1], [], []>} : vector<8x8xf32>, vector<8x128xf32>, vector<8x128xf32> -> vector<8x128xf32>
    %21 = arith.addf %16, %20 : vector<8x128xf32>
    %22 = vector.extract_strided_slice %3 {offsets = [8, 256], sizes = [8, 128], strides = [1, 1]} : vector<16x384xf32> to vector<8x128xf32>
    %23 = vector.extract_strided_slice %4 {offsets = [1, 0, 0], sizes = [1, 8, 8], strides = [1, 1, 1]} : vector<2x8x8xf32> to vector<1x8x8xf32>
    %24 = vector.shape_cast %23 : vector<1x8x8xf32> to vector<8x8xf32>
    %cst_11 = arith.constant dense<0.000000e+00> : vector<8x128xf32>
    %25 = tpu.matmul %24, %22, %cst_11 {dimension_numbers = #tpu.dot_dimension_numbers<[1], [0], [0], [1], [0, 0, 1, 1], [], []>} : vector<8x8xf32>, vector<8x128xf32>, vector<8x128xf32> -> vector<8x128xf32>
    %26 = arith.addf %21, %25 : vector<8x128xf32>
    %27 = tpu.concatenate %15, %26 in 0 : vector<8x128xf32>, vector<8x128xf32> -> vector<16x128xf32>
    %28 = vector.broadcast %2 : vector<1x128xf32> to vector<16x128xf32>
    %29 = arith.addf %27, %28 : vector<16x128xf32>
    %c0_12 = arith.constant 0 : index
    %c0_13 = arith.constant 0 : index
    %30 = vector.load %arg5[%c0_12, %c0_13] : memref<16x128xf32, #tpu.memory_space<vmem>>, vector<16x128xf32>
    tpu.vector_store %arg5[%c0_12, %c0_13], %29 {strides = array<i32>} : memref<16x128xf32, #tpu.memory_space<vmem>>, vector<16x128xf32>,
    return
  }
  func.func @transform_0(%arg0: i32) -> (i32, i32) {
    %c0_i32 = arith.constant 0 : i32
    %c0_i32_0 = arith.constant 0 : i32
    %c0_i32_1 = arith.constant 0 : i32
    return %c0_i32, %c0_i32_0 : i32, i32
  }
  func.func @transform_1(%arg0: i32) -> (i32, i32, i32) {
    %c0_i32 = arith.constant 0 : i32
    %c0_i32_0 = arith.constant 0 : i32
    %c0_i32_1 = arith.constant 0 : i32
    %c0_i32_2 = arith.constant 0 : i32
    return %c0_i32, %c0_i32_0, %c0_i32_1 : i32, i32, i32
  }
  func.func @transform_2(%arg0: i32) -> (i32, i32) {
    %c0_i32 = arith.constant 0 : i32
    %c0_i32_0 = arith.constant 0 : i32
    %c0_i32_1 = arith.constant 0 : i32
    return %c0_i32, %c0_i32_0 : i32, i32
  }
  func.func @transform_3(%arg0: i32) -> (i32, i32) {
    %c0_i32 = arith.constant 0 : i32
    %c0_i32_0 = arith.constant 0 : i32
    %c0_i32_1 = arith.constant 0 : i32
    return %c0_i32, %c0_i32_0 : i32, i32
  }
  func.func @transform_4(%arg0: i32) -> (i32, i32) {
    %c0_i32 = arith.constant 0 : i32
    %c0_i32_0 = arith.constant 0 : i32
    %c0_i32_1 = arith.constant 0 : i32
    return %c0_i32, %c0_i32_0 : i32, i32
  }
}

</mosaic_0001>

<llo_original>
// kernel: tpu_custom_call.1
$region0: #{tpu_custom_call.1}
  #allocation0 [shape = 'u32[]', space=smem, size = 0x4, offset = 0x4, fixed_abs, tag = 'smem constant byte address 0x4 - core index']
  #allocation1 [shape = 'u32[72,128]{1,0:T(1,128)}', space=vmem, size = 0x9000, scoped, tag = 'internal scratch']
  %s0 = inlined_call_operand.vmem [shape: f32[16,4], index: 0, kind: input, shape index: {}]
  %s1 = inlined_call_operand.vmem [shape: f32[2,8,8], index: 1, kind: input, shape index: {}]
  %s2 = inlined_call_operand.hbm [shape: f32[4,384], index: 2, kind: input, shape index: {}]
  %s3 = inlined_call_operand.vmem [shape: f32[1,128], index: 3, kind: input, shape index: {}]
  %s4 = inlined_call_operand.hbm [shape: f32[16,128], index: 4, kind: output, shape index: {}]
  %s5 = sld [smem:[#allocation0]]
  $region30: #{tpu_custom_call.1} parent=0
    _
  %s7 = ssub.s32 1, %s5
  %s8 = scalar_select 0, %s7, %s5
  $region1: #{tpu_custom_call.1} parent=0
    #allocation2 [shape = 'u8[6144]{0}', space=vmem, size = 0x1800, scoped, tag = 'input window, operand 2, single buffered']
    #allocation3 [shape = 's32[1]{0}', space=sflag, size = 0x4, scoped, tag = 'scoped memory for tpu_custom_call.1']
    #allocation4 [shape = 's32[1]{0}', space=sflag, size = 0x4, scoped, tag = 'scoped memory for tpu_custom_call.1']
    #allocation5 [shape = 'u8[8192]{0}', space=vmem, size = 0x2000, scoped, tag = 'output window, operand 0, single buffered']
    %9 = vsyncpa [#allocation3], 0
    %10 = vsyncpa [#allocation4], 0
    // Predicated region
    $region2: #{tpu_custom_call.1} parent=1 // pred_check
      _
    $region3: #{tpu_custom_call.1} parent=1 // pred_check_branch
      %12 = sbr.rel (0) target = $region5
    $region4: #{tpu_custom_call.1} parent=1 // pred_region
      _
    $region5: #{tpu_custom_call.1} parent=1 // pred_fallthru
      _
    // Predicated region
    $region6: #{tpu_custom_call.1} parent=1 // pred_check
      _
    $region7: #{tpu_custom_call.1} parent=1 // pred_check_branch
      %14 = sbr.rel (0) target = $region9
    $region8: #{tpu_custom_call.1} parent=1 // pred_region
      _
    $region9: #{tpu_custom_call.1} parent=1 // pred_fallthru
      _
    // Predicated region
    $region10: #{tpu_custom_call.1} parent=1 // pred_check
      _
    $region11: #{tpu_custom_call.1} parent=1 // pred_check_branch
      %16 = sbr.rel (0) target = $region13
    $region12: #{tpu_custom_call.1} parent=1 // pred_region
      %18 = vsyncadd [#allocation3], 0
      %s20 = sshll.u32 %s2, 4
      %s21 = int_to_ptr.hbm [resolvable:$true] %s20
      %s22 = sshll.u32 [#allocation2], 4
      %s23 = int_to_ptr.vmem [resolvable:$true] %s22
      %25 = dma.hbm_to_vmem [thread:$0]  %s21, 192, %s23, [#allocation3]
    $region13: #{tpu_custom_call.1} parent=1 // pred_fallthru
      _
    // Predicated region
    $region14: #{tpu_custom_call.1} parent=1 // pred_check
      _
    $region15: #{tpu_custom_call.1} parent=1 // pred_check_branch
      %27 = sbr.rel (0) target = $region17
    $region16: #{tpu_custom_call.1} parent=1 // pred_region
      _
    $region17: #{tpu_custom_call.1} parent=1 // pred_fallthru
      _
    // Predicated region
    $region18: #{tpu_custom_call.1} parent=1 // pred_check
      _
    $region19: #{tpu_custom_call.1} parent=1 // pred_check_branch
      %29 = sbr.rel (0) target = $region21
    $region20: #{tpu_custom_call.1} parent=1 // pred_region
      %31 = dma.done [#allocation3], 192
    $region21: #{tpu_custom_call.1} parent=1 // pred_fallthru
      _
    %v32 = vld [vmem:[%s0] sm:$0xff]
    %v33 = vld [vmem:[%s0 + $0x8] sm:$0xff]
    %v34 = vld [vmem:[#allocation2] sm:$0xff]
    %v35 = vld [vmem:[#allocation2 + $0x8] sm:$0xf]
    %v36 = vld [vmem:[%s3] sm:$0x1]
    %39 = vst [vmem:[#allocation1] ss:$2 sm:$0xff] %v34
    %s40 = scalar_lea.vmem [#allocation1], 16
    %41 = vst [vmem:[%s40] ss:$2 sm:$0xff] %v35
    %v42 = vld.sshfl [vmem:[#allocation1] sm:$0xff pattern:$0x75316420]
    %v43 = vld.sshfl [vmem:[#allocation1 + $0x8] sm:$0xff pattern:$0x75316420]
    %v44 = vld.sshfl [vmem:[#allocation1 + $0x10] sm:$0xff pattern:$0x75316420]
    %vm45 = vcmask 31744
    %v47 = vsel %vm45, %v32, 0
    %v50 = vsel %vm45, %v33, 0
    %vm52 = vcmask 1043456
    %v53 = vsel %vm52, %v42, 0
    %v55 = vsel %vm52, %v43, 0
    %v57 = vsel %vm52, %v44, 0
    %59 = vmatpush.msra.mxu0 0.0
    %60 = vmatpush.msra.mxu0 0.0
    %61 = vmatpush.msra.mxu0 0.0
    %62 = vmatpush.msra.mxu0 0.0
    %63 = vmatpush.msra.mxu0 0.0
    %64 = vmatpush.msra.mxu0 0.0
    %65 = vmatpush.msra.mxu0 0.0
    %66 = vmatpush.msra.mxu0 0.0
    %67 = vmatpush.msra.mxu0 0.0
    %68 = vmatpush.msra.mxu0 0.0
    %69 = vmatpush.msra.mxu0 0.0
    %70 = vmatpush.msra.mxu0 0.0
    %71 = vmatpush.msra.mxu0 0.0
    %72 = vmatpush.msra.mxu0 0.0
    %73 = vmatpush.msra.mxu0 0.0
    %74 = vmatpush.msra.mxu0 %v53
    %75 = vmatmul.f32.gmra.mxu0 %v47
    %v76 = vpop.f32.mrf.mxu0
    %v77 = vadd.f32 0.0, %v76
    %78 = vmatmul.f32.gmra.mxu0 %v50
    %v79 = vpop.f32.mrf.mxu0
    %v80 = vadd.f32 0.0, %v79
    %81 = vdwg.mxu0
    %82 = vmatpush.msra.mxu0 0.0
    %83 = vmatpush.msra.mxu0 0.0
    %84 = vmatpush.msra.mxu0 0.0
    %85 = vmatpush.msra.mxu0 0.0
    %86 = vmatpush.msra.mxu0 0.0
    %87 = vmatpush.msra.mxu0 0.0
    %88 = vmatpush.msra.mxu0 0.0
    %89 = vmatpush.msra.mxu0 0.0
    %90 = vmatpush.msra.mxu0 0.0
    %91 = vmatpush.msra.mxu0 0.0
    %92 = vmatpush.msra.mxu0 0.0
    %93 = vmatpush.msra.mxu0 0.0
    %94 = vmatpush.msra.mxu0 0.0
    %95 = vmatpush.msra.mxu0 0.0
    %96 = vmatpush.msra.mxu0 0.0
    %97 = vmatpush.msra.mxu0 %v55
    %98 = vmatmul.f32.gmra.mxu0 %v47
    %v99 = vpop.f32.mrf.mxu0
    %v100 = vadd.f32 0.0, %v99
    %101 = vmatmul.f32.gmra.mxu0 %v50
    %v102 = vpop.f32.mrf.mxu0
    %v103 = vadd.f32 0.0, %v102
    %104 = vdwg.mxu0
    %105 = vmatpush.msra.mxu0 0.0
    %106 = vmatpush.msra.mxu0 0.0
    %107 = vmatpush.msra.mxu0 0.0
    %108 = vmatpush.msra.mxu0 0.0
    %109 = vmatpush.msra.mxu0 0.0
    %110 = vmatpush.msra.mxu0 0.0
    %111 = vmatpush.msra.mxu0 0.0
    %112 = vmatpush.msra.mxu0 0.0
    %113 = vmatpush.msra.mxu0 0.0
    %114 = vmatpush.msra.mxu0 0.0
    %115 = vmatpush.msra.mxu0 0.0
    %116 = vmatpush.msra.mxu0 0.0
    %117 = vmatpush.msra.mxu0 0.0
    %118 = vmatpush.msra.mxu0 0.0
    %119 = vmatpush.msra.mxu0 0.0
    %120 = vmatpush.msra.mxu0 %v57
    %121 = vmatmul.f32.gmra.mxu0 %v47
    %v122 = vpop.f32.mrf.mxu0
    %v123 = vadd.f32 0.0, %v122
    %124 = vmatmul.f32.gmra.mxu0 %v50
    %v125 = vpop.f32.mrf.mxu0
    %v126 = vadd.f32 0.0, %v125
    %127 = vdwg.mxu0
    %v128 = vld [vmem:[%s1] sm:$0xff]
    %v129 = vld [vmem:[%s1 + $0x8] sm:$0xff]
    %vm130 = vcmask 64512
    %v132 = vsel %vm130, %v128, 0
    %134 = vmatpush.msra.mxu0 0.0
    %135 = vmatpush.msra.mxu0 0.0
    %136 = vmatpush.msra.mxu0 0.0
    %137 = vmatpush.msra.mxu0 0.0
    %138 = vmatpush.msra.mxu0 0.0
    %139 = vmatpush.msra.mxu0 0.0
    %140 = vmatpush.msra.mxu0 0.0
    %141 = vmatpush.msra.mxu0 0.0
    %142 = vmatpush.msra.mxu0 0.0
    %143 = vmatpush.msra.mxu0 0.0
    %144 = vmatpush.msra.mxu0 0.0
    %145 = vmatpush.msra.mxu0 0.0
    %146 = vmatpush.msra.mxu0 0.0
    %147 = vmatpush.msra.mxu0 0.0
    %148 = vmatpush.msra.mxu0 0.0
    %149 = vmatpush.msra.mxu0 %v100
    %150 = vmatmul.f32.gmra.mxu0 %v132
    %v151 = vpop.f32.mrf.mxu0
    %v152 = vadd.f32 0.0, %v151
    %153 = vdwg.mxu0
    %v154 = vadd.f32 %v77, %v152
    %v156 = vsel %vm130, %v129, 0
    %158 = vmatpush.msra.mxu0 0.0
    %159 = vmatpush.msra.mxu0 0.0
    %160 = vmatpush.msra.mxu0 0.0
    %161 = vmatpush.msra.mxu0 0.0
    %162 = vmatpush.msra.mxu0 0.0
    %163 = vmatpush.msra.mxu0 0.0
    %164 = vmatpush.msra.mxu0 0.0
    %165 = vmatpush.msra.mxu0 0.0
    %166 = vmatpush.msra.mxu0 0.0
    %167 = vmatpush.msra.mxu0 0.0
    %168 = vmatpush.msra.mxu0 0.0
    %169 = vmatpush.msra.mxu0 0.0
    %170 = vmatpush.msra.mxu0 0.0
    %171 = vmatpush.msra.mxu0 0.0
    %172 = vmatpush.msra.mxu0 0.0
    %173 = vmatpush.msra.mxu0 %v123
    %174 = vmatmul.f32.gmra.mxu0 %v156
    %v175 = vpop.f32.mrf.mxu0
    %v176 = vadd.f32 0.0, %v175
    %177 = vdwg.mxu0
    %v178 = vadd.f32 %v154, %v176
    %179 = vmatpush.msra.mxu0 0.0
    %180 = vmatpush.msra.mxu0 0.0
    %181 = vmatpush.msra.mxu0 0.0
    %182 = vmatpush.msra.mxu0 0.0
    %183 = vmatpush.msra.mxu0 0.0
    %184 = vmatpush.msra.mxu0 0.0
    %185 = vmatpush.msra.mxu0 0.0
    %186 = vmatpush.msra.mxu0 0.0
    %187 = vmatpush.msra.mxu0 0.0
    %188 = vmatpush.msra.mxu0 0.0
    %189 = vmatpush.msra.mxu0 0.0
    %190 = vmatpush.msra.mxu0 0.0
    %191 = vmatpush.msra.mxu0 0.0
    %192 = vmatpush.msra.mxu0 0.0
    %193 = vmatpush.msra.mxu0 0.0
    %194 = vmatpush.msra.mxu0 %v103
    %195 = vmatmul.f32.gmra.mxu0 %v132
    %v196 = vpop.f32.mrf.mxu0
    %v197 = vadd.f32 0.0, %v196
    %198 = vdwg.mxu0
    %v199 = vadd.f32 %v80, %v197
    %200 = vmatpush.msra.mxu0 0.0
    %201 = vmatpush.msra.mxu0 0.0
    %202 = vmatpush.msra.mxu0 0.0
    %203 = vmatpush.msra.mxu0 0.0
    %204 = vmatpush.msra.mxu0 0.0
    %205 = vmatpush.msra.mxu0 0.0
    %206 = vmatpush.msra.mxu0 0.0
    %207 = vmatpush.msra.mxu0 0.0
    %208 = vmatpush.msra.mxu0 0.0
    %209 = vmatpush.msra.mxu0 0.0
    %210 = vmatpush.msra.mxu0 0.0
    %211 = vmatpush.msra.mxu0 0.0
    %212 = vmatpush.msra.mxu0 0.0
    %213 = vmatpush.msra.mxu0 0.0
    %214 = vmatpush.msra.mxu0 0.0
    %215 = vmatpush.msra.mxu0 %v126
    %216 = vmatmul.f32.gmra.mxu0 %v156
    %v217 = vpop.f32.mrf.mxu0
    %v218 = vadd.f32 0.0, %v217
    %219 = vdwg.mxu0
    %v220 = vadd.f32 %v199, %v218
    %v222 = vperm.slane %v36, 0
    %v224 = vadd.f32 %v178, %v222
    %v225 = vadd.f32 %v220, %v222
    %226 = vst [vmem:[#allocation5] sm:$0xff] %v224
    %227 = vst [vmem:[#allocation5 + $0x8] sm:$0xff] %v225
    // Predicated region
    $region22: #{tpu_custom_call.1} parent=1 // pred_check
      _
    $region23: #{tpu_custom_call.1} parent=1 // pred_check_branch
      %229 = sbr.rel (0) target = $region25
    $region24: #{tpu_custom_call.1} parent=1 // pred_region
      %231 = vsyncadd [#allocation4], 0
      %s232 = sshll.u32 [#allocation5], 4
      %s233 = int_to_ptr.vmem [resolvable:$true] %s232
      %s234 = sshll.u32 %s4, 4
      %s235 = int_to_ptr.hbm [resolvable:$true] %s234
      %240 = dma.vmem_to_hbm [thread:$0]  %s233, 256, %s235, [#allocation4], 128, 128, 8
    $region25: #{tpu_custom_call.1} parent=1 // pred_fallthru
      _
    // Predicated region
    $region26: #{tpu_custom_call.1} parent=1 // pred_check
      _
    $region27: #{tpu_custom_call.1} parent=1 // pred_check_branch
      %242 = sbr.rel (0) target = $region29
    $region28: #{tpu_custom_call.1} parent=1 // pred_region
      %244 = dma.done [#allocation4], 256
    $region29: #{tpu_custom_call.1} parent=1 // pred_fallthru
      _
    %245 = vsyncpa [#allocation3], 1
    %246 = vsyncpa [#allocation4], 1

</llo_original>
